<compile_context>
chip_gen: v6e
topology: v6e:2x2x1
jax: 0.10.0
libtpu: 0.0.40
codegen_flags: <defaults>
</compile_context>

<pallas_src>
import functools

import jax
import jax.numpy as jnp
from jax import lax
from jax.experimental import pallas as pl
from jax.experimental.pallas import tpu as pltpu


def _round_up(x, m):
    return (x + m - 1) // m * m


# ---------------------------------------------------------------------------
# Fused Pallas kernel
# ---------------------------------------------------------------------------

def _fused_multiheaded_kernel(
    node_ref,    # [Np, D]   f32  (rows >= n_nodes are zero padding)
    edge_ref,    # [Nep, D]  f32
    w_ref,       # [4, D, D] bf16: 0=wq_eff(scaled) 1=wk_eff(cols>=dh zero) 2=to_out 3=lin_edge
    vec_ref,     # [8, D]    f32 : 0=bq_eff(scaled) 1=bk_eff(pad) 2=bo 3=be
                 #                 4=ln_node_g 5=ln_node_b 6=ln_edge_g 7=ln_edge_b
    projk_ref,   # [Np, k]   f32  (first Np rows of proj_k)
    x_out_ref,   # [1, Np, D]
    y_out_ref,   # [1, Nep, D]
    *, heads, dh, n_nodes, eps):
    pid = pl.program_id(0)

    # ------------------------- node / attention branch ----------------------
    @pl.when(pid == 0)
    def _node_branch():
        n_f32 = node_ref[...].astype(jnp.float32)                     # [Np, D]
        n_bf = n_f32.astype(jnp.bfloat16)
        Np = n_f32.shape[0]

        vecs = vec_ref[...]                                           # [8, D] f32
        bq, bk = vecs[0:1, :], vecs[1:2, :dh]
        bo = vecs[2:3, :]
        ln_g, ln_b = vecs[4:5, :], vecs[5:6, :]

        # queries (1/sqrt(dh) folded into wq/bq at fold time) and the single
        # shared key head (lin_query already folded into both projections).
        q = jnp.dot(n_bf, w_ref[0], preferred_element_type=jnp.float32) + bq   # [Np, D]
        keys = jnp.dot(n_bf, w_ref[1][:, :dh],
                       preferred_element_type=jnp.float32) + bk                # [Np, dh]

        # Linformer reduction kv = proj_k[:N].T @ keys (mask padded rows).
        if n_nodes < Np:
            row = lax.broadcasted_iota(jnp.int32, (Np, 1), 0)
            keys = jnp.where(row < n_nodes, keys, 0.0)
        kv = lax.dot_general(projk_ref[...], keys,
                             dimension_numbers=(((0,), (0,)), ((), ())),
                             preferred_element_type=jnp.float32)               # [k, dh]
        kv_bf = kv.astype(jnp.bfloat16)

        # one_kv_head + share_kv: kv is identical for every head, so stack the
        # heads on the sublane axis -> one QK^T push, one softmax pass, one
        # attn@V push for all heads.
        q_stack = jnp.concatenate(
            [q[:, h * dh:(h + 1) * dh] for h in range(heads)], axis=0)         # [H*Np, dh]
        dots = lax.dot_general(q_stack.astype(jnp.bfloat16), kv_bf,
                               dimension_numbers=(((1,), (1,)), ((), ())),
                               preferred_element_type=jnp.float32)             # [H*Np, k]
        mx = jnp.max(dots, axis=-1, keepdims=True)
        ex = jnp.exp(dots - mx)
        sm = jnp.sum(ex, axis=-1, keepdims=True)
        attn = ex * pl.reciprocal(sm, approx=True)                    # EUP divide
        out_stack = jnp.dot(attn.astype(jnp.bfloat16), kv_bf,
                            preferred_element_type=jnp.float32)                # [H*Np, dh]

        # Concat heads back on the lane axis and do a single to_out matmul.
        out_all = jnp.concatenate(
            [out_stack[h * Np:(h + 1) * Np, :] for h in range(heads)], axis=1)  # [Np, D]
        x_attn = jnp.dot(out_all.astype(jnp.bfloat16), w_ref[2],
                         preferred_element_type=jnp.float32) + bo               # [Np, D]

        # LayerNorm (biased variance, PyTorch eps) + residual.
        # TODO(synk): F.dropout is stochastic in training mode; implemented as
        # eval-mode identity (would need pltpu.prng_seed/prng_random_bits).
        mean = jnp.mean(x_attn, axis=-1, keepdims=True)
        var = jnp.mean(jnp.square(x_attn - mean), axis=-1, keepdims=True)
        xn = (x_attn - mean) * lax.rsqrt(var + eps)
        x_out_ref[0] = (xn * ln_g + ln_b + n_f32).astype(x_out_ref.dtype)
        # This iteration's block of the edge output is discarded by the wrapper.
        y_out_ref[0] = jnp.zeros(y_out_ref.shape[1:], y_out_ref.dtype)

    # ------------------------------ edge branch ------------------------------
    @pl.when(pid == 1)
    def _edge_branch():
        vecs = vec_ref[...]
        be = vecs[3:4, :]
        ln_g, ln_b = vecs[6:7, :], vecs[7:8, :]

        ef = edge_ref[...].astype(jnp.float32)                         # [Nep, D]
        me = jnp.dot(ef.astype(jnp.bfloat16), w_ref[3],
                     preferred_element_type=jnp.float32) + be
        mean = jnp.mean(me, axis=-1, keepdims=True)
        var = jnp.mean(jnp.square(me - mean), axis=-1, keepdims=True)
        yn = (me - mean) * lax.rsqrt(var + eps)
        y_out_ref[0] = (yn * ln_g + ln_b + ef).astype(y_out_ref.dtype)
        # This iteration's block of the node output is discarded by the wrapper.
        x_out_ref[0] = jnp.zeros(x_out_ref.shape[1:], x_out_ref.dtype)


# ---------------------------------------------------------------------------
# One-time parameter folding + forward wrapper (single pallas_call)
# ---------------------------------------------------------------------------

def fold_params(params, *, heads, out_channels):
    """Fold lin_query into to_q/to_k, fold the attention scale into the query
    projection, and pack weights / vectors into two dense blocks."""
    D = heads * out_channels
    dh = out_channels
    assert params["wq"].shape[0] == D, "residual requires in_channels == heads*out_channels"
    scale = dh ** -0.5

    wq_eff = (params["wq"] @ params["to_q"]) * scale                  # [D, D]
    bq_eff = (params["bq"].reshape(1, -1) @ params["to_q"]) * scale   # [1, D]
    wk_eff = params["wq"] @ params["to_k"]                            # [D, dh]  (to_k has no bias)
    bk_eff = params["bq"].reshape(1, -1) @ params["to_k"]             # [1, dh]

    wk_pad = jnp.zeros((D, D), jnp.float32).at[:, :dh].set(wk_eff)
    w_stack = jnp.stack([wq_eff, wk_pad, params["to_out_w"],
                         params["we"]]).astype(jnp.bfloat16)          # [4, D, D]

    bk_pad = jnp.zeros((D,), jnp.float32).at[:dh].set(bk_eff.reshape(-1))
    vecs = jnp.stack([
        bq_eff.reshape(-1), bk_pad,
        params["to_out_b"], params["be"],
        params["ln_node_g"], params["ln_node_b"],
        params["ln_edge_g"], params["ln_edge_b"],
    ]).astype(jnp.float32)                                            # [8, D]

    return dict(w_stack=w_stack, vecs=vecs, proj_k=params["proj_k"])


def multiheaded_forward(folded, node_feats, edge_feats, *, heads, out_channels, eps=1e-5):
    D = heads * out_channels
    dh = out_channels
    N, Ne = node_feats.shape[0], edge_feats.shape[0]
    seq_len, k = folded["proj_k"].shape

    # Pad row counts to sublane multiples of 8 so proj_k's (Np, k) block obeys
    # the (8,128) rule for arbitrary node counts.  Padded key rows are masked
    # out of the kv reduction inside the kernel; padded output rows are sliced
    # off below.
    Np, Nep = _round_up(N, 8), _round_up(Ne, 8)
    assert Np <= seq_len, f"num_nodes ({N}) must be <= linformer seq_len ({seq_len})"
    node_p = jnp.pad(node_feats, ((0, Np - N), (0, 0)))
    edge_p = jnp.pad(edge_feats, ((0, Nep - Ne), (0, 0)))

    kernel = functools.partial(_fused_multiheaded_kernel,
                               heads=heads, dh=dh, n_nodes=N, eps=eps)

    def fixed(shape):
        nd = len(shape)
        return pl.BlockSpec(shape, lambda i, _nd=nd: (0,) * _nd)

    x_pad, y_pad = pl.pallas_call(
        kernel,
        out_shape=(jax.ShapeDtypeStruct((2, Np, D), node_feats.dtype),
                   jax.ShapeDtypeStruct((2, Nep, D), edge_feats.dtype)),
        # iteration 0: node/attention branch; iteration 1: edge branch.
        # "parallel" lets v7x put the two branches on separate TensorCores.
        grid=(2,),
        in_specs=[
            fixed((Np, D)),                               # node feats
            fixed((Nep, D)),                              # edge feats
            fixed(folded["w_stack"].shape),               # packed weights
            fixed(folded["vecs"].shape),                  # packed vectors
            pl.BlockSpec((Np, k), lambda i: (0, 0)),      # first Np rows of proj_k
        ],
        out_specs=(pl.BlockSpec((1, Np, D), lambda i: (i, 0, 0)),
                   pl.BlockSpec((1, Nep, D), lambda i: (i, 0, 0))),
        compiler_params=pltpu.CompilerParams(dimension_semantics=("parallel",)),
    )(node_p, edge_p, folded["w_stack"], folded["vecs"], folded["proj_k"])

    # TODO(synk): for very large N/Ne add row tiling (kv needs its own
    # reduction phase first), present lane-dense (multiple-of-128) output
    # slabs, and add a graph/batch grid axis to amortize launch cost; size
    # tiles against v7x's 64 MiB VMEM and v5e's 16 MiB scoped default.
    return x_pad[0, :N, :], y_pad[1, :Ne, :]


# ---------------------------------------------------------------------------
# Pure-JAX reference (f32, unfolded params) for a correctness check
# ---------------------------------------------------------------------------

def reference_forward(params, node_feats, edge_feats, *, heads, out_channels, eps=1e-5):
    dh = out_channels
    N = node_feats.shape[0]
    xp = node_feats @ params["wq"] + params["bq"]            # lin_query
    q = xp @ params["to_q"]
    keys = xp @ params["to_k"]
    kv = params["proj_k"][:N].T @ keys                       # [k, dh]
    outs = []
    for h in range(heads):
        qh = q[:, h * dh:(h + 1) * dh]
        dots = (qh @ kv.T) * (dh ** -0.5)
        attn = jax.nn.softmax(dots, axis=-1)
        outs.append(attn @ kv)
    x_attn = jnp.concatenate(outs, axis=1) @ params["to_out_w"] + params["to_out_b"]

    def ln(v, g, b):
        mu = v.mean(-1, keepdims=True)
        var = ((v - mu) ** 2).mean(-1, keepdims=True)
        return (v - mu) / jnp.sqrt(var + eps) * g + b

    x = ln(x_attn, params["ln_node_g"], params["ln_node_b"]) + node_feats
    me = edge_feats @ params["we"] + params["be"]
    y = ln(me, params["ln_edge_g"], params["ln_edge_b"]) + edge_feats
    return x, y


# ---------------------------------------------------------------------------
# Main
# ---------------------------------------------------------------------------

if __name__ == "__main__":
    heads, out_channels = 2, 16
    D = heads * out_channels            # 32
    in_channels = D                     # residual add requires in_channels == heads*out_channels
    k = 8                               # linformer projection size
    seq_len = 1024                      # hardcoded in the module's LinformerSelfAttention
    n_nodes, n_edges = 8, 16

    root = jax.random.PRNGKey(0)
    ks = jax.random.split(root, 11)

    def init(kk, shape, scale=0.1):
        return (scale * jax.random.normal(kk, shape)).astype(jnp.float32)

    params = dict(
        wq=init(ks[0], (in_channels, D)), bq=init(ks[1], (D,)),          # lin_query ([in,out] layout)
        we=init(ks[2], (in_channels, D)), be=init(ks[3], (D,)),          # lin_edge
        to_q=init(ks[4], (D, D)),                                        # to_q (no bias)
        to_k=init(ks[5], (D, out_channels)),                             # to_k (one_kv_head, no bias)
        proj_k=init(ks[6], (seq_len, k)),                                # shared proj (share_kv)
        to_out_w=init(ks[7], (D, D)), to_out_b=init(ks[8], (D,)),        # to_out
        ln_node_g=jnp.ones((D,), jnp.float32), ln_node_b=jnp.zeros((D,), jnp.float32),
        ln_edge_g=jnp.ones((D,), jnp.float32), ln_edge_b=jnp.zeros((D,), jnp.float32),
    )

    node_feats = init(ks[9], (n_nodes, in_channels), 1.0)
    edge_feats = init(ks[10], (n_edges, in_channels), 1.0)

    folded = jax.tree_util.tree_map(
        jax.block_until_ready,
        fold_params(params, heads=heads, out_channels=out_channels))

    x, y = multiheaded_forward(folded, node_feats, edge_feats,
                               heads=heads, out_channels=out_channels)
    jax.block_until_ready((x, y))

    assert x.shape == (n_nodes, D) and y.shape == (n_edges, D)
    x_ref, y_ref = reference_forward(params, node_feats, edge_feats,
                                     heads=heads, out_channels=out_channels)
    # Loose tolerance: kernel matmuls run bf16 on the MXU (f32 accumulate).
    assert jnp.allclose(x, x_ref, atol=5e-2, rtol=5e-2)
    assert jnp.allclose(y, y_ref, atol=5e-2, rtol=5e-2)
    print("KERNEL_OK")
</pallas_src>

<mosaic_0001>
module attributes {stable_mosaic.version = 11 : i64} {
  func.func @_fused_multiheaded_kernel(%arg0: i32, %arg1: memref<8x32xf32, #tpu.memory_space<vmem>>, %arg2: memref<16x32xf32, #tpu.memory_space<vmem>>, %arg3: memref<4x32x32xbf16, #tpu.memory_space<vmem>>, %arg4: memref<8x32xf32, #tpu.memory_space<vmem>>, %arg5: memref<8x8xf32, #tpu.memory_space<vmem>>, %arg6: memref<1x8x32xf32, #tpu.memory_space<vmem>>, %arg7: memref<1x16x32xf32, #tpu.memory_space<vmem>>) attributes {dimension_semantics = [#tpu.dimension_semantics<parallel>], iteration_bounds = array<i64: 2>, scalar_prefetch = 0 : i64, scratch_operands = 0 : i64, tpu.core_type = #tpu.core_type<tc>, window_params = [{pipeline_mode = #tpu.pipeline_mode<synchronous>, transform_indices = @transform_0, window_bounds = array<i64: 8, 32>}, {pipeline_mode = #tpu.pipeline_mode<synchronous>, transform_indices = @transform_1, window_bounds = array<i64: 16, 32>}, {pipeline_mode = #tpu.pipeline_mode<synchronous>, transform_indices = @transform_2, window_bounds = array<i64: 4, 32, 32>}, {pipeline_mode = #tpu.pipeline_mode<synchronous>, transform_indices = @transform_3, window_bounds = array<i64: 8, 32>}, {transform_indices = @transform_4, window_bounds = array<i64: 8, 8>}, {transform_indices = @transform_5, window_bounds = array<i64: 1, 8, 32>}, {transform_indices = @transform_6, window_bounds = array<i64: 1, 16, 32>}]} {
    %c0_i32 = arith.constant 0 : i32
    %0 = arith.cmpi eq, %arg0, %c0_i32 : i32
    %1 = arith.extui %0 : i1 to i32
    %c0_i32_0 = arith.constant 0 : i32
    %2 = arith.cmpi ne, %1, %c0_i32_0 : i32
    scf.if %2 {
      %c0 = arith.constant 0 : index
      %c0_2 = arith.constant 0 : index
      %6 = vector.load %arg1[%c0, %c0_2] : memref<8x32xf32, #tpu.memory_space<vmem>>, vector<8x32xf32>
      %7 = arith.truncf %6 : vector<8x32xf32> to vector<8x32xbf16>
      %c0_3 = arith.constant 0 : index
      %c0_4 = arith.constant 0 : index
      %8 = vector.load %arg4[%c0_3, %c0_4] : memref<8x32xf32, #tpu.memory_space<vmem>>, vector<8x32xf32>
      %9 = vector.extract_strided_slice %8 {offsets = [0, 0], sizes = [1, 32], strides = [1, 1]} : vector<8x32xf32> to vector<1x32xf32>
      %10 = vector.extract_strided_slice %8 {offsets = [1, 0], sizes = [1, 16], strides = [1, 1]} : vector<8x32xf32> to vector<1x16xf32>
      %11 = vector.extract_strided_slice %8 {offsets = [2, 0], sizes = [1, 32], strides = [1, 1]} : vector<8x32xf32> to vector<1x32xf32>
      %12 = vector.extract_strided_slice %8 {offsets = [4, 0], sizes = [1, 32], strides = [1, 1]} : vector<8x32xf32> to vector<1x32xf32>
      %13 = vector.extract_strided_slice %8 {offsets = [5, 0], sizes = [1, 32], strides = [1, 1]} : vector<8x32xf32> to vector<1x32xf32>
      %c0_5 = arith.constant 0 : index
      %c0_6 = arith.constant 0 : index
      %c0_7 = arith.constant 0 : index
      %14 = vector.load %arg3[%c0_5, %c0_6, %c0_7] : memref<4x32x32xbf16, #tpu.memory_space<vmem>>, vector<1x32x32xbf16>
      %15 = vector.shape_cast %14 : vector<1x32x32xbf16> to vector<32x32xbf16>
      %cst = arith.constant dense<0.000000e+00> : vector<8x32xf32>
      %16 = tpu.matmul %7, %15, %cst {dimension_numbers = #tpu.dot_dimension_numbers<[1], [0], [0], [1], [0, 0, 1, 1], [], []>} : vector<8x32xbf16>, vector<32x32xbf16>, vector<8x32xf32> -> vector<8x32xf32>
      %17 = vector.broadcast %9 : vector<1x32xf32> to vector<8x32xf32>
      %18 = arith.addf %16, %17 : vector<8x32xf32>
      %c1 = arith.constant 1 : index
      %c0_8 = arith.constant 0 : index
      %c0_9 = arith.constant 0 : index
      %19 = vector.load %arg3[%c1, %c0_8, %c0_9] : memref<4x32x32xbf16, #tpu.memory_space<vmem>>, vector<1x32x32xbf16>
      %20 = vector.shape_cast %19 : vector<1x32x32xbf16> to vector<32x32xbf16>
      %21 = vector.extract_strided_slice %20 {offsets = [0, 0], sizes = [32, 16], strides = [1, 1]} : vector<32x32xbf16> to vector<32x16xbf16>
      %cst_10 = arith.constant dense<0.000000e+00> : vector<8x16xf32>
      %22 = tpu.matmul %7, %21, %cst_10 {dimension_numbers = #tpu.dot_dimension_numbers<[1], [0], [0], [1], [0, 0, 1, 1], [], []>} : vector<8x32xbf16>, vector<32x16xbf16>, vector<8x16xf32> -> vector<8x16xf32>
      %23 = vector.broadcast %10 : vector<1x16xf32> to vector<8x16xf32>
      %24 = arith.addf %22, %23 : vector<8x16xf32>
      %c0_11 = arith.constant 0 : index
      %c0_12 = arith.constant 0 : index
      %25 = vector.load %arg5[%c0_11, %c0_12] : memref<8x8xf32, #tpu.memory_space<vmem>>, vector<8x8xf32>
      %cst_13 = arith.constant dense<0.000000e+00> : vector<8x16xf32>
      %26 = tpu.matmul %25, %24, %cst_13 {dimension_numbers = #tpu.dot_dimension_numbers<[0], [0], [1], [1], [0, 1, 1, 1], [], []>} : vector<8x8xf32>, vector<8x16xf32>, vector<8x16xf32> -> vector<8x16xf32>
      %27 = arith.truncf %26 : vector<8x16xf32> to vector<8x16xbf16>
      %28 = vector.extract_strided_slice %18 {offsets = [0, 0], sizes = [8, 16], strides = [1, 1]} : vector<8x32xf32> to vector<8x16xf32>
      %29 = vector.extract_strided_slice %18 {offsets = [0, 16], sizes = [8, 16], strides = [1, 1]} : vector<8x32xf32> to vector<8x16xf32>
      %30 = tpu.concatenate %28, %29 in 0 : vector<8x16xf32>, vector<8x16xf32> -> vector<16x16xf32>
      %31 = arith.truncf %30 : vector<16x16xf32> to vector<16x16xbf16>
      %cst_14 = arith.constant dense<0.000000e+00> : vector<16x8xf32>
      %32 = tpu.matmul %31, %27, %cst_14 {dimension_numbers = #tpu.dot_dimension_numbers<[1], [1], [0], [0], [0, 0, 1, 0], [], []>} : vector<16x16xbf16>, vector<8x16xbf16>, vector<16x8xf32> -> vector<16x8xf32>
      %cst_15 = arith.constant dense<0xFF800000> : vector<16xf32>
      %33 = vector.multi_reduction <maximumf>, %32, %cst_15 [1] : vector<16x8xf32> to vector<16xf32>
      %34 = vector.shape_cast %33 : vector<16xf32> to vector<16x1xf32>
      %35 = vector.broadcast %34 : vector<16x1xf32> to vector<16x8xf32>
      %36 = arith.subf %32, %35 : vector<16x8xf32>
      %37 = math.exp %36 : vector<16x8xf32>
      %cst_16 = arith.constant dense<0.000000e+00> : vector<16xf32>
      %38 = vector.multi_reduction <add>, %37, %cst_16 [1] : vector<16x8xf32> to vector<16xf32>
      %39 = vector.shape_cast %38 : vector<16xf32> to vector<16x1xf32>
      %40 = tpu.reciprocal %39 {approx = true} : vector<16x1xf32> -> vector<16x1xf32>
      %41 = vector.broadcast %40 : vector<16x1xf32> to vector<16x8xf32>
      %42 = arith.mulf %37, %41 : vector<16x8xf32>
      %43 = arith.truncf %42 : vector<16x8xf32> to vector<16x8xbf16>
      %cst_17 = arith.constant dense<0.000000e+00> : vector<16x16xf32>
      %44 = tpu.matmul %43, %27, %cst_17 {dimension_numbers = #tpu.dot_dimension_numbers<[1], [0], [0], [1], [0, 0, 1, 1], [], []>} : vector<16x8xbf16>, vector<8x16xbf16>, vector<16x16xf32> -> vector<16x16xf32>
      %45 = vector.extract_strided_slice %44 {offsets = [0, 0], sizes = [8, 16], strides = [1, 1]} : vector<16x16xf32> to vector<8x16xf32>
      %46 = vector.extract_strided_slice %44 {offsets = [8, 0], sizes = [8, 16], strides = [1, 1]} : vector<16x16xf32> to vector<8x16xf32>
      %47 = tpu.concatenate %45, %46 in 1 : vector<8x16xf32>, vector<8x16xf32> -> vector<8x32xf32>
      %48 = arith.truncf %47 : vector<8x32xf32> to vector<8x32xbf16>
      %c2 = arith.constant 2 : index
      %c0_18 = arith.constant 0 : index
      %c0_19 = arith.constant 0 : index
      %49 = vector.load %arg3[%c2, %c0_18, %c0_19] : memref<4x32x32xbf16, #tpu.memory_space<vmem>>, vector<1x32x32xbf16>
      %50 = vector.shape_cast %49 : vector<1x32x32xbf16> to vector<32x32xbf16>
      %cst_20 = arith.constant dense<0.000000e+00> : vector<8x32xf32>
      %51 = tpu.matmul %48, %50, %cst_20 {dimension_numbers = #tpu.dot_dimension_numbers<[1], [0], [0], [1], [0, 0, 1, 1], [], []>} : vector<8x32xbf16>, vector<32x32xbf16>, vector<8x32xf32> -> vector<8x32xf32>
      %52 = vector.broadcast %11 : vector<1x32xf32> to vector<8x32xf32>
      %53 = arith.addf %51, %52 : vector<8x32xf32>
      %cst_21 = arith.constant dense<0.000000e+00> : vector<8xf32>
      %54 = vector.multi_reduction <add>, %53, %cst_21 [1] : vector<8x32xf32> to vector<8xf32>
      %55 = vector.shape_cast %54 : vector<8xf32> to vector<8x1xf32>
      %cst_22 = arith.constant 3.200000e+01 : f32
      %56 = vector.broadcast %cst_22 : f32 to vector<8x1xf32>
      %57 = arith.divf %55, %56 : vector<8x1xf32>
      %58 = vector.broadcast %57 : vector<8x1xf32> to vector<8x32xf32>
      %59 = arith.subf %53, %58 : vector<8x32xf32>
      %60 = arith.mulf %59, %59 : vector<8x32xf32>
      %cst_23 = arith.constant dense<0.000000e+00> : vector<8xf32>
      %61 = vector.multi_reduction <add>, %60, %cst_23 [1] : vector<8x32xf32> to vector<8xf32>
      %62 = vector.shape_cast %61 : vector<8xf32> to vector<8x1xf32>
      %cst_24 = arith.constant 3.200000e+01 : f32
      %63 = vector.broadcast %cst_24 : f32 to vector<8x1xf32>
      %64 = arith.divf %62, %63 : vector<8x1xf32>
      %65 = vector.broadcast %57 : vector<8x1xf32> to vector<8x32xf32>
      %66 = arith.subf %53, %65 : vector<8x32xf32>
      %cst_25 = arith.constant 9.99999974E-6 : f32
      %67 = vector.broadcast %cst_25 : f32 to vector<8x1xf32>
      %68 = arith.addf %64, %67 : vector<8x1xf32>
      %69 = math.rsqrt %68 : vector<8x1xf32>
      %70 = vector.broadcast %69 : vector<8x1xf32> to vector<8x32xf32>
      %71 = arith.mulf %66, %70 : vector<8x32xf32>
      %72 = vector.broadcast %12 : vector<1x32xf32> to vector<8x32xf32>
      %73 = arith.mulf %71, %72 : vector<8x32xf32>
      %74 = vector.broadcast %13 : vector<1x32xf32> to vector<8x32xf32>
      %75 = arith.addf %73, %74 : vector<8x32xf32>
      %76 = arith.addf %75, %6 : vector<8x32xf32>
      %c0_26 = arith.constant 0 : index
      %c0_27 = arith.constant 0 : index
      %c0_28 = arith.constant 0 : index
      %77 = vector.load %arg6[%c0_26, %c0_27, %c0_28] : memref<1x8x32xf32, #tpu.memory_space<vmem>>, vector<1x8x32xf32>
      %78 = vector.shape_cast %77 : vector<1x8x32xf32> to vector<8x32xf32>
      %79 = vector.shape_cast %76 : vector<8x32xf32> to vector<1x8x32xf32>
      tpu.vector_store %arg6[%c0_26, %c0_27, %c0_28], %79 {strides = array<i32>} : memref<1x8x32xf32, #tpu.memory_space<vmem>>, vector<1x8x32xf32>,
      %cst_29 = arith.constant 0.000000e+00 : f32
      %80 = vector.broadcast %cst_29 : f32 to vector<16x32xf32>
      %c0_30 = arith.constant 0 : index
      %c0_31 = arith.constant 0 : index
      %c0_32 = arith.constant 0 : index
      %81 = vector.load %arg7[%c0_30, %c0_31, %c0_32] : memref<1x16x32xf32, #tpu.memory_space<vmem>>, vector<1x16x32xf32>
      %82 = vector.shape_cast %81 : vector<1x16x32xf32> to vector<16x32xf32>
      %83 = vector.shape_cast %80 : vector<16x32xf32> to vector<1x16x32xf32>
      tpu.vector_store %arg7[%c0_30, %c0_31, %c0_32], %83 {strides = array<i32>} : memref<1x16x32xf32, #tpu.memory_space<vmem>>, vector<1x16x32xf32>,
    } else {
    }
    %c1_i32 = arith.constant 1 : i32
    %3 = arith.cmpi eq, %arg0, %c1_i32 : i32
    %4 = arith.extui %3 : i1 to i32
    %c0_i32_1 = arith.constant 0 : i32
    %5 = arith.cmpi ne, %4, %c0_i32_1 : i32
    scf.if %5 {
      %c0 = arith.constant 0 : index
      %c0_2 = arith.constant 0 : index
      %6 = vector.load %arg4[%c0, %c0_2] : memref<8x32xf32, #tpu.memory_space<vmem>>, vector<8x32xf32>
      %7 = vector.extract_strided_slice %6 {offsets = [3, 0], sizes = [1, 32], strides = [1, 1]} : vector<8x32xf32> to vector<1x32xf32>
      %8 = vector.extract_strided_slice %6 {offsets = [6, 0], sizes = [1, 32], strides = [1, 1]} : vector<8x32xf32> to vector<1x32xf32>
      %9 = vector.extract_strided_slice %6 {offsets = [7, 0], sizes = [1, 32], strides = [1, 1]} : vector<8x32xf32> to vector<1x32xf32>
      %c0_3 = arith.constant 0 : index
      %c0_4 = arith.constant 0 : index
      %10 = vector.load %arg2[%c0_3, %c0_4] : memref<16x32xf32, #tpu.memory_space<vmem>>, vector<16x32xf32>
      %11 = arith.truncf %10 : vector<16x32xf32> to vector<16x32xbf16>
      %c3 = arith.constant 3 : index
      %c0_5 = arith.constant 0 : index
      %c0_6 = arith.constant 0 : index
      %12 = vector.load %arg3[%c3, %c0_5, %c0_6] : memref<4x32x32xbf16, #tpu.memory_space<vmem>>, vector<1x32x32xbf16>
      %13 = vector.shape_cast %12 : vector<1x32x32xbf16> to vector<32x32xbf16>
      %cst = arith.constant dense<0.000000e+00> : vector<16x32xf32>
      %14 = tpu.matmul %11, %13, %cst {dimension_numbers = #tpu.dot_dimension_numbers<[1], [0], [0], [1], [0, 0, 1, 1], [], []>} : vector<16x32xbf16>, vector<32x32xbf16>, vector<16x32xf32> -> vector<16x32xf32>
      %15 = vector.broadcast %7 : vector<1x32xf32> to vector<16x32xf32>
      %16 = arith.addf %14, %15 : vector<16x32xf32>
      %cst_7 = arith.constant dense<0.000000e+00> : vector<16xf32>
      %17 = vector.multi_reduction <add>, %16, %cst_7 [1] : vector<16x32xf32> to vector<16xf32>
      %18 = vector.shape_cast %17 : vector<16xf32> to vector<16x1xf32>
      %cst_8 = arith.constant 3.200000e+01 : f32
      %19 = vector.broadcast %cst_8 : f32 to vector<16x1xf32>
      %20 = arith.divf %18, %19 : vector<16x1xf32>
      %21 = vector.broadcast %20 : vector<16x1xf32> to vector<16x32xf32>
      %22 = arith.subf %16, %21 : vector<16x32xf32>
      %23 = arith.mulf %22, %22 : vector<16x32xf32>
      %cst_9 = arith.constant dense<0.000000e+00> : vector<16xf32>
      %24 = vector.multi_reduction <add>, %23, %cst_9 [1] : vector<16x32xf32> to vector<16xf32>
      %25 = vector.shape_cast %24 : vector<16xf32> to vector<16x1xf32>
      %cst_10 = arith.constant 3.200000e+01 : f32
      %26 = vector.broadcast %cst_10 : f32 to vector<16x1xf32>
      %27 = arith.divf %25, %26 : vector<16x1xf32>
      %28 = vector.broadcast %20 : vector<16x1xf32> to vector<16x32xf32>
      %29 = arith.subf %16, %28 : vector<16x32xf32>
      %cst_11 = arith.constant 9.99999974E-6 : f32
      %30 = vector.broadcast %cst_11 : f32 to vector<16x1xf32>
      %31 = arith.addf %27, %30 : vector<16x1xf32>
      %32 = math.rsqrt %31 : vector<16x1xf32>
      %33 = vector.broadcast %32 : vector<16x1xf32> to vector<16x32xf32>
      %34 = arith.mulf %29, %33 : vector<16x32xf32>
      %35 = vector.broadcast %8 : vector<1x32xf32> to vector<16x32xf32>
      %36 = arith.mulf %34, %35 : vector<16x32xf32>
      %37 = vector.broadcast %9 : vector<1x32xf32> to vector<16x32xf32>
      %38 = arith.addf %36, %37 : vector<16x32xf32>
      %39 = arith.addf %38, %10 : vector<16x32xf32>
      %c0_12 = arith.constant 0 : index
      %c0_13 = arith.constant 0 : index
      %c0_14 = arith.constant 0 : index
      %40 = vector.load %arg7[%c0_12, %c0_13, %c0_14] : memref<1x16x32xf32, #tpu.memory_space<vmem>>, vector<1x16x32xf32>
      %41 = vector.shape_cast %40 : vector<1x16x32xf32> to vector<16x32xf32>
      %42 = vector.shape_cast %39 : vector<16x32xf32> to vector<1x16x32xf32>
      tpu.vector_store %arg7[%c0_12, %c0_13, %c0_14], %42 {strides = array<i32>} : memref<1x16x32xf32, #tpu.memory_space<vmem>>, vector<1x16x32xf32>,
      %cst_15 = arith.constant 0.000000e+00 : f32
      %43 = vector.broadcast %cst_15 : f32 to vector<8x32xf32>
      %c0_16 = arith.constant 0 : index
      %c0_17 = arith.constant 0 : index
      %c0_18 = arith.constant 0 : index
      %44 = vector.load %arg6[%c0_16, %c0_17, %c0_18] : memref<1x8x32xf32, #tpu.memory_space<vmem>>, vector<1x8x32xf32>
      %45 = vector.shape_cast %44 : vector<1x8x32xf32> to vector<8x32xf32>
      %46 = vector.shape_cast %43 : vector<8x32xf32> to vector<1x8x32xf32>
      tpu.vector_store %arg6[%c0_16, %c0_17, %c0_18], %46 {strides = array<i32>} : memref<1x8x32xf32, #tpu.memory_space<vmem>>, vector<1x8x32xf32>,
    } else {
    }
    return
  }
  func.func @transform_0(%arg0: i32) -> (i32, i32) {
    %c0_i32 = arith.constant 0 : i32
    %c0_i32_0 = arith.constant 0 : i32
    %c0_i32_1 = arith.constant 0 : i32
    return %c0_i32, %c0_i32_0 : i32, i32
  }
  func.func @transform_1(%arg0: i32) -> (i32, i32) {
    %c0_i32 = arith.constant 0 : i32
    %c0_i32_0 = arith.constant 0 : i32
    %c0_i32_1 = arith.constant 0 : i32
    return %c0_i32, %c0_i32_0 : i32, i32
  }
  func.func @transform_2(%arg0: i32) -> (i32, i32, i32) {
    %c0_i32 = arith.constant 0 : i32
    %c0_i32_0 = arith.constant 0 : i32
    %c0_i32_1 = arith.constant 0 : i32
    %c0_i32_2 = arith.constant 0 : i32
    return %c0_i32, %c0_i32_0, %c0_i32_1 : i32, i32, i32
  }
  func.func @transform_3(%arg0: i32) -> (i32, i32) {
    %c0_i32 = arith.constant 0 : i32
    %c0_i32_0 = arith.constant 0 : i32
    %c0_i32_1 = arith.constant 0 : i32
    return %c0_i32, %c0_i32_0 : i32, i32
  }
  func.func @transform_4(%arg0: i32) -> (i32, i32) {
    %c0_i32 = arith.constant 0 : i32
    %c0_i32_0 = arith.constant 0 : i32
    %c0_i32_1 = arith.constant 0 : i32
    return %c0_i32, %c0_i32_0 : i32, i32
  }
  func.func @transform_5(%arg0: i32) -> (i32, i32, i32) {
    %c0_i32 = arith.constant 0 : i32
    %c0_i32_0 = arith.constant 0 : i32
    %c0_i32_1 = arith.constant 0 : i32
    return %arg0, %c0_i32, %c0_i32_0 : i32, i32, i32
  }
  func.func @transform_6(%arg0: i32) -> (i32, i32, i32) {
    %c0_i32 = arith.constant 0 : i32
    %c0_i32_0 = arith.constant 0 : i32
    %c0_i32_1 = arith.constant 0 : i32
    return %arg0, %c0_i32, %c0_i32_0 : i32, i32, i32
  }
}

</mosaic_0001>

<llo_original>
// kernel: tpu_custom_call.1
$region0: #{tpu_custom_call.1}
  #allocation0 [shape = 'u32[]', space=smem, size = 0x4, offset = 0x4, fixed_abs, tag = 'smem constant byte address 0x4 - core index']
  #allocation1 [shape = 'u32[144,128]{1,0:T(1,128)}', space=vmem, size = 0x12000, scoped, tag = 'internal scratch']
  %s0 = inlined_call_operand.vmem [shape: f32[8,32], index: 0, kind: input, shape index: {}]
  %s1 = inlined_call_operand.vmem [shape: f32[16,32], index: 1, kind: input, shape index: {}]
  %s2 = inlined_call_operand.vmem [shape: bf16[4,32,32], index: 2, kind: input, shape index: {}]
  %s3 = inlined_call_operand.vmem [shape: f32[8,32], index: 3, kind: input, shape index: {}]
  %s4 = inlined_call_operand.vmem [shape: f32[1024,8], index: 4, kind: input, shape index: {}]
  %s5 = inlined_call_operand.hbm [shape: f32[2,8,32], index: 5, kind: output, shape index: {0}]
  %s6 = inlined_call_operand.hbm [shape: f32[2,16,32], index: 6, kind: output, shape index: {1}]
  %7 = xla_tuple %s5, %s6
  %s8 = sld [smem:[#allocation0]]
  $region69: #{tpu_custom_call.1} parent=0
    _
  %s10 = ssub.s32 1, %s8
  %s11 = scalar_select 0, %s10, %s8
  $region1: #{tpu_custom_call.1} parent=0
    #allocation2 [shape = 'u8[8192]{0}', space=vmem, size = 0x2000, scoped, tag = 'output window, operand 0']
    #allocation3 [shape = 's32[2]{0}', space=sflag, size = 0x8, scoped, tag = 'scoped memory for tpu_custom_call.1']
    #allocation4 [shape = 'u8[16384]{0}', space=vmem, size = 0x4000, scoped, tag = 'output window, operand 1']
    #allocation5 [shape = 's32[2]{0}', space=sflag, size = 0x8, scoped, tag = 'scoped memory for tpu_custom_call.1']
    %12 = vsyncpa [#allocation3], 0
    %s13 = scalar_lea.sflag [#allocation3], 1
    %14 = vsyncpa %s13, 0
    %15 = vsyncpa [#allocation5], 0
    %s16 = scalar_lea.sflag [#allocation5], 1
    %17 = vsyncpa %s16, 0
    loop: start=0, step=1, limit=4
    $region2: #{tpu_custom_call.1} parent=1 // loop_pre_header
      _
    $region3: #{tpu_custom_call.1} parent=1 // loop_header
      %s19 = sphi 0, %s23
      %p20 = scmp.ge.s32.totalorder %s19, 4
      %s27 = sphi 0, %s27
      %s29 = sphi 0, %s27
      %s30 = sphi 0, %s29
      %s44 = sphi 0, %s30
      %s48 = sphi 0, %s48
      %s50 = sphi 0, %s48
      %s51 = sphi 0, %s50
      %s65 = sphi 0, %s51
      %s69 = sphi 0, %s69
      %s71 = sphi 0, %s69
      %s72 = sphi 0, %s71
      %s86 = sphi 0, %s72
      %s90 = sphi 0, %s90
      %s92 = sphi 0, %s90
      %s93 = sphi 0, %s92
      %s107 = sphi 0, %s93
      %s111 = sphi 0, %s111
      %s113 = sphi 0, %s111
      %s114 = sphi 0, %s113
      %s128 = sphi 0, %s114
      %s134 = sphi 0, %s136
      %s137 = sphi 0, %s134
      %s138 = sphi 0, %s137
      %s154 = sphi 0, %s138
      %s160 = sphi 0, %s162
      %s163 = sphi 0, %s160
      %s164 = sphi 0, %s163
      %s180 = sphi 0, %s164
    $region4: #{tpu_custom_call.1} parent=1 // loop_header_branch
      %22 = sbr.rel (%p20) target = $region8
    $region5: #{tpu_custom_call.1} parent=1 // loop_body
      %s24 = ssub.s32 %s19, 1
      %s25 = ssub.s32 %s19, 2
      %s26 = sadd.s32 %s19, 1
      %s28 = sadd.s32 %s27, 1
      %p31 = scmp.eq.s32.totalorder %s19, 1
      %p32 = scmp.ne.s32.totalorder %s27, %s29
      %p33 = scmp.eq.s32.totalorder %s19, 0
      %p34 = por %p32, %p33
      %p35 = scmp.ne.s32.totalorder %s27, %s29
      %p36 = scmp.eq.s32.totalorder %s24, 1
      %p37 = por %p35, %p36
      %p38 = scmp.ne.s32.totalorder %s29, %s30
      %p39 = scmp.eq.s32.totalorder %s24, 0
      %p40 = por %p38, %p39
      %p41 = scmp.ne.s32.totalorder %s29, %s30
      %p42 = scmp.eq.s32.totalorder %s25, 1
      %p43 = por %p41, %p42
      %p45 = scmp.ne.s32.totalorder %s30, %s44
      %p46 = scmp.eq.s32.totalorder %s25, 0
      %p47 = por %p45, %p46
      %s49 = sadd.s32 %s48, 1
      %p52 = scmp.eq.s32.totalorder %s19, 1
      %p53 = scmp.ne.s32.totalorder %s48, %s50
      %p54 = scmp.eq.s32.totalorder %s19, 0
      %p55 = por %p53, %p54
      %p56 = scmp.ne.s32.totalorder %s48, %s50
      %p57 = scmp.eq.s32.totalorder %s24, 1
      %p58 = por %p56, %p57
      %p59 = scmp.ne.s32.totalorder %s50, %s51
      %p60 = scmp.eq.s32.totalorder %s24, 0
      %p61 = por %p59, %p60
      %p62 = scmp.ne.s32.totalorder %s50, %s51
      %p63 = scmp.eq.s32.totalorder %s25, 1
      %p64 = por %p62, %p63
      %p66 = scmp.ne.s32.totalorder %s51, %s65
      %p67 = scmp.eq.s32.totalorder %s25, 0
      %p68 = por %p66, %p67
      %s70 = sadd.s32 %s69, 1
      %p73 = scmp.eq.s32.totalorder %s19, 1
      %p74 = scmp.ne.s32.totalorder %s69, %s71
      %p75 = scmp.eq.s32.totalorder %s19, 0
      %p76 = por %p74, %p75
      %p77 = scmp.ne.s32.totalorder %s69, %s71
      %p78 = scmp.eq.s32.totalorder %s24, 1
      %p79 = por %p77, %p78
      %p80 = scmp.ne.s32.totalorder %s71, %s72
      %p81 = scmp.eq.s32.totalorder %s24, 0
      %p82 = por %p80, %p81
      %p83 = scmp.ne.s32.totalorder %s71, %s72
      %p84 = scmp.eq.s32.totalorder %s25, 1
      %p85 = por %p83, %p84
      %p87 = scmp.ne.s32.totalorder %s72, %s86
      %p88 = scmp.eq.s32.totalorder %s25, 0
      %p89 = por %p87, %p88
      %s91 = sadd.s32 %s90, 1
      %p94 = scmp.eq.s32.totalorder %s19, 1
      %p95 = scmp.ne.s32.totalorder %s90, %s92
      %p96 = scmp.eq.s32.totalorder %s19, 0
      %p97 = por %p95, %p96
      %p98 = scmp.ne.s32.totalorder %s90, %s92
      %p99 = scmp.eq.s32.totalorder %s24, 1
      %p100 = por %p98, %p99
      %p101 = scmp.ne.s32.totalorder %s92, %s93
      %p102 = scmp.eq.s32.totalorder %s24, 0
      %p103 = por %p101, %p102
      %p104 = scmp.ne.s32.totalorder %s92, %s93
      %p105 = scmp.eq.s32.totalorder %s25, 1
      %p106 = por %p104, %p105
      %p108 = scmp.ne.s32.totalorder %s93, %s107
      %p109 = scmp.eq.s32.totalorder %s25, 0
      %p110 = por %p108, %p109
      %s112 = sadd.s32 %s111, 1
      %p115 = scmp.eq.s32.totalorder %s19, 1
      %p116 = scmp.ne.s32.totalorder %s111, %s113
      %p117 = scmp.eq.s32.totalorder %s19, 0
      %p118 = por %p116, %p117
      %p119 = scmp.ne.s32.totalorder %s111, %s113
      %p120 = scmp.eq.s32.totalorder %s24, 1
      %p121 = por %p119, %p120
      %p122 = scmp.ne.s32.totalorder %s113, %s114
      %p123 = scmp.eq.s32.totalorder %s24, 0
      %p124 = por %p122, %p123
      %p125 = scmp.ne.s32.totalorder %s113, %s114
      %p126 = scmp.eq.s32.totalorder %s25, 1
      %p127 = por %p125, %p126
      %p129 = scmp.ne.s32.totalorder %s114, %s128
      %p130 = scmp.eq.s32.totalorder %s25, 0
      %p131 = por %p129, %p130
      %s132 = ssub.s32 %s19, %s26
      %p133 = scmp.eq.s32.totalorder %s132, 0
      %s135 = sadd.s32 %s134, 1
      %s136 = scalar_select %p133, %s134, %s135
      %p139 = pneg %p133
      %p140 = scmp.eq.s32.totalorder %s19, 1
      %p141 = por %p139, %p140
      %p142 = scmp.ne.s32.totalorder %s134, %s137
      %p143 = scmp.eq.s32.totalorder %s19, 0
      %p144 = por %p142, %p143
      %p145 = scmp.ne.s32.totalorder %s134, %s137
      %p146 = scmp.eq.s32.totalorder %s24, 1
      %p147 = por %p145, %p146
      %p148 = scmp.ne.s32.totalorder %s137, %s138
      %p149 = scmp.eq.s32.totalorder %s24, 0
      %p150 = por %p148, %p149
      %p151 = scmp.ne.s32.totalorder %s137, %s138
      %p152 = scmp.eq.s32.totalorder %s25, 1
      %p153 = por %p151, %p152
      %p155 = scmp.ne.s32.totalorder %s138, %s154
      %p156 = scmp.eq.s32.totalorder %s25, 0
      %p157 = por %p155, %p156
      %s158 = ssub.s32 %s19, %s26
      %p159 = scmp.eq.s32.totalorder %s158, 0
      %s161 = sadd.s32 %s160, 1
      %s162 = scalar_select %p159, %s160, %s161
      %p165 = pneg %p159
      %p166 = scmp.eq.s32.totalorder %s19, 1
      %p167 = por %p165, %p166
      %p168 = scmp.ne.s32.totalorder %s160, %s163
      %p169 = scmp.eq.s32.totalorder %s19, 0
      %p170 = por %p168, %p169
      %p171 = scmp.ne.s32.totalorder %s160, %s163
      %p172 = scmp.eq.s32.totalorder %s24, 1
      %p173 = por %p171, %p172
      %p174 = scmp.ne.s32.totalorder %s163, %s164
      %p175 = scmp.eq.s32.totalorder %s24, 0
      %p176 = por %p174, %p175
      %p177 = scmp.ne.s32.totalorder %s163, %s164
      %p178 = scmp.eq.s32.totalorder %s25, 1
      %p179 = por %p177, %p178
      %p181 = scmp.ne.s32.totalorder %s164, %s180
      %p182 = scmp.eq.s32.totalorder %s25, 0
      %p183 = por %p181, %p182
      %p184 = scmp.le.s32.totalorder 1, %s19
      %p185 = scmp.lt.s32.totalorder %s19, 3
      %p186 = pnand %p184, %p185
      %p187 = pneg %p186
      // Predicated region
      $region9: #{tpu_custom_call.1} parent=5 // pred_check
        _
      $region10: #{tpu_custom_call.1} parent=5 // pred_check_branch
        %189 = sbr.rel (%p186) target = $region12
      $region11: #{tpu_custom_call.1} parent=5 // pred_region
        %s190 = ssub.s32 %s19, 1
        // Predicated region
        $region13: #{tpu_custom_call.1} parent=11 // pred_check
          %p191 = pneg %p40
        $region14: #{tpu_custom_call.1} parent=11 // pred_check_branch
          %193 = sbr.rel (%p191) target = $region16
        $region15: #{tpu_custom_call.1} parent=11 // pred_region
          _
        $region16: #{tpu_custom_call.1} parent=11 // pred_fallthru
          _
        // Predicated region
        $region17: #{tpu_custom_call.1} parent=11 // pred_check
          %p194 = pneg %p61
        $region18: #{tpu_custom_call.1} parent=11 // pred_check_branch
          %196 = sbr.rel (%p194) target = $region20
        $region19: #{tpu_custom_call.1} parent=11 // pred_region
          _
        $region20: #{tpu_custom_call.1} parent=11 // pred_fallthru
          _
        // Predicated region
        $region21: #{tpu_custom_call.1} parent=11 // pred_check
          %p197 = pneg %p82
        $region22: #{tpu_custom_call.1} parent=11 // pred_check_branch
          %199 = sbr.rel (%p197) target = $region24
        $region23: #{tpu_custom_call.1} parent=11 // pred_region
          _
        $region24: #{tpu_custom_call.1} parent=11 // pred_fallthru
          _
        // Predicated region
        $region25: #{tpu_custom_call.1} parent=11 // pred_check
          %p200 = pneg %p103
        $region26: #{tpu_custom_call.1} parent=11 // pred_check_branch
          %202 = sbr.rel (%p200) target = $region28
        $region27: #{tpu_custom_call.1} parent=11 // pred_region
          _
        $region28: #{tpu_custom_call.1} parent=11 // pred_fallthru
          _
        // Predicated region
        $region29: #{tpu_custom_call.1} parent=11 // pred_check
          %p203 = pneg %p124
        $region30: #{tpu_custom_call.1} parent=11 // pred_check_branch
          %205 = sbr.rel (%p203) target = $region32
        $region31: #{tpu_custom_call.1} parent=11 // pred_region
          _
        $region32: #{tpu_custom_call.1} parent=11 // pred_fallthru
          _
      $region12: #{tpu_custom_call.1} parent=5 // pred_fallthru
        _
      %p206 = scmp.lt.s32.totalorder %s19, 2
      // Predicated region
      $region33: #{tpu_custom_call.1} parent=5 // pred_check
        %p207 = pneg %p206
      $region34: #{tpu_custom_call.1} parent=5 // pred_check_branch
        %209 = sbr.rel (%p207) target = $region36
      $region35: #{tpu_custom_call.1} parent=5 // pred_region
        _
      $region36: #{tpu_custom_call.1} parent=5 // pred_fallthru
        _
      %p210 = scmp.le.s32.totalorder 1, %s19
      %p211 = scmp.lt.s32.totalorder %s19, 3
      %p212 = pnand %p210, %p211
      %p213 = pneg %p212
      // Predicated region
      $region37: #{tpu_custom_call.1} parent=5 // pred_check
        _
      $region38: #{tpu_custom_call.1} parent=5 // pred_check_branch
        %215 = sbr.rel (%p212) target = $region40
      $region39: #{tpu_custom_call.1} parent=5 // pred_region
        %s216 = ssub.s32 %s19, 1
        %p217 = pneg %p40
        %p218 = pneg %p37
        %p219 = pneg %p61
        %p220 = pneg %p58
        %p221 = pneg %p82
        %p222 = pneg %p79
        %p223 = pneg %p103
        %p224 = pneg %p100
        %p225 = pneg %p124
        %p226 = pneg %p121
        %p227 = pneg %p150
        %p228 = pneg %p147
        %s229 = sand.u32 %s137, 1
        %s230 = scalar_lea.sflag [#allocation3], %s229
        %s231 = sand.u32 %s137, 1
        %s232 = smul.addr %s231, 8
        %s233 = scalar_lea.vmem [#allocation2], %s232
        %p234 = pneg %p176
        %p235 = pneg %p173
        %s236 = sand.u32 %s163, 1
        %s237 = scalar_lea.sflag [#allocation5], %s236
        %s238 = sand.u32 %s163, 1
        %s239 = smul.addr %s238, 16
        %s240 = scalar_lea.vmem [#allocation4], %s239
        %p242 = scmp.eq.s32.totalorder %s24, 0
        // Predicated region
        $region41: #{tpu_custom_call.1} parent=39 // pred_check
          %p243 = pneg %p242
        $region42: #{tpu_custom_call.1} parent=39 // pred_check_branch
          %245 = sbr.rel (%p243) target = $region44
        $region43: #{tpu_custom_call.1} parent=39 // pred_region
          %v246 = vld [vmem:[%s0] sm:$0xff]
          %v247 = vpack.c.bf16 %v246, %v246
          %v248 = vld [vmem:[%s3] sm:$0xff]
          %v249 = vld [vmem:[%s2] sm:$0xf]
          %v250 = vld [vmem:[%s2 + $0x4] sm:$0xf]
          %v251 = vld [vmem:[%s2 + $0x8] sm:$0xf]
          %v252 = vld [vmem:[%s2 + $0xc] sm:$0xf]
          %v253 = vlaneseq
          %v254 = vshrl.u32 %v253, 7
          %v255 = vsub.s32 0, %v254
          %v256 = vrot.slane %v248, %v255
          %v261 = vunpack.c.l.b16 %v249
          %v262 = vunpack.c.l.b16 %v250
          %v263 = vunpack.c.l.b16 %v251
          %v264 = vunpack.c.l.b16 %v252
          %v265 = vpack.c.b16 %v262, %v261
          %v266 = vpack.c.b16 %v264, %v263
          %vm269 = vcmask 261120
          %v271 = vsel %vm269, %v247, 0
          %273 = vmatprep.subr.bf16.mxu0 0
          %274 = vmatpush1.bf16.msra.mxu0 0
          %275 = vmatprep.subr.bf16.mxu0 0
          %276 = vmatpush1.bf16.msra.mxu0 0
          %277 = vmatprep.subr.bf16.mxu0 0
          %278 = vmatpush1.bf16.msra.mxu0 0
          %279 = vmatprep.subr.bf16.mxu0 0
          %280 = vmatpush1.bf16.msra.mxu0 0
          %281 = vmatprep.subr.bf16.mxu0 0
          %282 = vmatpush1.bf16.msra.mxu0 0
          %283 = vmatprep.subr.bf16.mxu0 0
          %284 = vmatpush1.bf16.msra.mxu0 0
          %285 = vmatprep.subr.bf16.mxu0 0
          %286 = vmatpush1.bf16.msra.mxu0 %v266
          %287 = vmatprep.subr.bf16.mxu0 0
          %288 = vmatpush1.bf16.msra.mxu0 %v265
          %289 = vmatprep.subr.bf16.mxu0 0
          %290 = vmatpush2.bf16.msra.mxu0 0
          %291 = vmatprep.subr.bf16.mxu0 0
          %292 = vmatpush2.bf16.msra.mxu0 0
          %293 = vmatprep.subr.bf16.mxu0 0
          %294 = vmatpush2.bf16.msra.mxu0 0
          %295 = vmatprep.subr.bf16.mxu0 0
          %296 = vmatpush2.bf16.msra.mxu0 0
          %297 = vmatprep.subr.bf16.mxu0 0
          %298 = vmatpush2.bf16.msra.mxu0 0
          %299 = vmatprep.subr.bf16.mxu0 0
          %300 = vmatpush2.bf16.msra.mxu0 0
          %301 = vmatprep.subr.bf16.mxu0 0
          %302 = vmatpush2.bf16.msra.mxu0 0
          %303 = vmatprep.subr.bf16.mxu0 0
          %304 = vmatpush2.bf16.msra.mxu0 0
          %305 = vmatprep.mubr.bf16.mxu0 0
          %306 = vmatmul.mubr.bf16.gmra.mxu0 %v271
          %v307 = vpop.f32.mrf.mxu0
          %v308 = vadd.f32 %v256, %v307
          %v309 = vpop.f32.mrf.mxu0
          %v310 = vpop.f32.mrf.mxu0
          %v311 = vpop.f32.mrf.mxu0
          %312 = vdwg.mxu0
          %s313 = scalar_lea.vmem %s2, 16
          %v314 = vld [vmem:[%s313] sm:$0xf]
          %v315 = vld [vmem:[%s313 + $0x4] sm:$0xf]
          %v316 = vld [vmem:[%s313 + $0x8] sm:$0xf]
          %v317 = vld [vmem:[%s313 + $0xc] sm:$0xf]
          %v318 = vlaneseq
          %v319 = vshrl.u32 %v318, 7
          %v320 = vsub.s32 1, %v319
          %v321 = vrot.slane %v248, %v320
          %v326 = vunpack.c.l.b16 %v314
          %v327 = vunpack.c.l.b16 %v315
          %v328 = vunpack.c.l.b16 %v316
          %v329 = vunpack.c.l.b16 %v317
          %v330 = vpack.c.b16 %v327, %v326
          %v331 = vpack.c.b16 %v329, %v328
          %334 = vmatprep.subr.bf16.mxu0 0
          %335 = vmatpush1.bf16.msra.mxu0 0
          %336 = vmatprep.subr.bf16.mxu0 0
          %337 = vmatpush1.bf16.msra.mxu0 0
          %338 = vmatprep.subr.bf16.mxu0 0
          %339 = vmatpush1.bf16.msra.mxu0 0
          %340 = vmatprep.subr.bf16.mxu0 0
          %341 = vmatpush1.bf16.msra.mxu0 0
          %342 = vmatprep.subr.bf16.mxu0 0
          %343 = vmatpush1.bf16.msra.mxu0 0
          %344 = vmatprep.subr.bf16.mxu0 0
          %345 = vmatpush1.bf16.msra.mxu0 0
          %346 = vmatprep.subr.bf16.mxu0 0
          %347 = vmatpush1.bf16.msra.mxu0 %v331
          %348 = vmatprep.subr.bf16.mxu0 0
          %349 = vmatpush1.bf16.msra.mxu0 %v330
          %350 = vmatprep.subr.bf16.mxu0 0
          %351 = vmatpush2.bf16.msra.mxu0 0
          %352 = vmatprep.subr.bf16.mxu0 0
          %353 = vmatpush2.bf16.msra.mxu0 0
          %354 = vmatprep.subr.bf16.mxu0 0
          %355 = vmatpush2.bf16.msra.mxu0 0
          %356 = vmatprep.subr.bf16.mxu0 0
          %357 = vmatpush2.bf16.msra.mxu0 0
          %358 = vmatprep.subr.bf16.mxu0 0
          %359 = vmatpush2.bf16.msra.mxu0 0
          %360 = vmatprep.subr.bf16.mxu0 0
          %361 = vmatpush2.bf16.msra.mxu0 0
          %362 = vmatprep.subr.bf16.mxu0 0
          %363 = vmatpush2.bf16.msra.mxu0 0
          %364 = vmatprep.subr.bf16.mxu0 0
          %365 = vmatpush2.bf16.msra.mxu0 0
          %366 = vmatprep.mubr.bf16.mxu0 0
          %367 = vmatmul.mubr.bf16.gmra.mxu0 %v271
          %v368 = vpop.f32.mrf.mxu0
          %v369 = vadd.f32 %v321, %v368
          %v370 = vpop.f32.mrf.mxu0
          %v371 = vpop.f32.mrf.mxu0
          %v372 = vpop.f32.mrf.mxu0
          %373 = vdwg.mxu0
          %v374 = vld [vmem:[%s4] sm:$0xff]
          %375 = vxpose.xlu0.b32.start [1/16] %v374, 128
          %376 = vxpose.xlu0.b32.cont [2/16] 0.0, 128
          %377 = vxpose.xlu0.b32.cont [3/16] 0.0, 128
          %378 = vxpose.xlu0.b32.cont [4/16] 0.0, 128
          %379 = vxpose.xlu0.b32.cont [5/16] 0.0, 128
          %380 = vxpose.xlu0.b32.cont [6/16] 0.0, 128
          %381 = vxpose.xlu0.b32.cont [7/16] 0.0, 128
          %382 = vxpose.xlu0.b32.cont [8/16] 0.0, 128
          %383 = vxpose.xlu0.b32.cont [9/16] 0.0, 128
          %384 = vxpose.xlu0.b32.cont [10/16] 0.0, 128
          %385 = vxpose.xlu0.b32.cont [11/16] 0.0, 128
          %386 = vxpose.xlu0.b32.cont [12/16] 0.0, 128
          %387 = vxpose.xlu0.b32.cont [13/16] 0.0, 128
          %388 = vxpose.xlu0.b32.cont [14/16] 0.0, 128
          %389 = vxpose.xlu0.b32.cont [15/16] 0.0, 128
          %390 = vxpose.xlu0.b32.end [16/16] 0.0, 128
          %v391 = vpop.trf.xlu0
          %v392 = vpop.trf.xlu0
          %v393 = vpop.trf.xlu0
          %v394 = vpop.trf.xlu0
          %v395 = vpop.trf.xlu0
          %v396 = vpop.trf.xlu0
          %v397 = vpop.trf.xlu0
          %v398 = vpop.trf.xlu0
          %v399 = vpop.trf.xlu0
          %v400 = vpop.trf.xlu0
          %v401 = vpop.trf.xlu0
          %v402 = vpop.trf.xlu0
          %v403 = vpop.trf.xlu0
          %v404 = vpop.trf.xlu0
          %v405 = vpop.trf.xlu0
          %v406 = vpop.trf.xlu0
          %vm407 = vcmask 64512
          %v409 = vsel %vm407, %v391, 0
          %411 = vmatprep.subr.mxu0 0.0
          %412 = vmatpush1.msra.mxu0 0.0
          %413 = vmatprep.subr.mxu0 0.0
          %414 = vmatpush1.msra.mxu0 0.0
          %415 = vmatprep.subr.mxu0 0.0
          %416 = vmatpush1.msra.mxu0 0.0
          %417 = vmatprep.subr.mxu0 0.0
          %418 = vmatpush1.msra.mxu0 0.0
          %419 = vmatprep.subr.mxu0 0.0
          %420 = vmatpush1.msra.mxu0 0.0
          %421 = vmatprep.subr.mxu0 0.0
          %422 = vmatpush1.msra.mxu0 0.0
          %423 = vmatprep.subr.mxu0 0.0
          %424 = vmatpush1.msra.mxu0 0.0
          %425 = vmatprep.subr.mxu0 0.0
          %426 = vmatpush1.msra.mxu0 0.0
          %427 = vmatprep.subr.mxu0 0.0
          %428 = vmatpush1.msra.mxu0 0.0
          %429 = vmatprep.subr.mxu0 0.0
          %430 = vmatpush1.msra.mxu0 0.0
          %431 = vmatprep.subr.mxu0 0.0
          %432 = vmatpush1.msra.mxu0 0.0
          %433 = vmatprep.subr.mxu0 0.0
          %434 = vmatpush1.msra.mxu0 0.0
          %435 = vmatprep.subr.mxu0 0.0
          %436 = vmatpush1.msra.mxu0 0.0
          %437 = vmatprep.subr.mxu0 0.0
          %438 = vmatpush1.msra.mxu0 0.0
          %439 = vmatprep.subr.mxu0 0.0
          %440 = vmatpush1.msra.mxu0 0.0
          %441 = vmatprep.subr.mxu0 0.0
          %442 = vmatpush1.msra.mxu0 %v369
          %443 = vmatprep.subr.mxu0 0.0
          %444 = vmatpush2.msra.mxu0 0.0
          %445 = vmatprep.subr.mxu0 0.0
          %446 = vmatpush2.msra.mxu0 0.0
          %447 = vmatprep.subr.mxu0 0.0
          %448 = vmatpush2.msra.mxu0 0.0
          %449 = vmatprep.subr.mxu0 0.0
          %450 = vmatpush2.msra.mxu0 0.0
          %451 = vmatprep.subr.mxu0 0.0
          %452 = vmatpush2.msra.mxu0 0.0
          %453 = vmatprep.subr.mxu0 0.0
          %454 = vmatpush2.msra.mxu0 0.0
          %455 = vmatprep.subr.mxu0 0.0
          %456 = vmatpush2.msra.mxu0 0.0
          %457 = vmatprep.subr.mxu0 0.0
          %458 = vmatpush2.msra.mxu0 0.0
          %459 = vmatprep.subr.mxu0 0.0
          %460 = vmatpush2.msra.mxu0 0.0
          %461 = vmatprep.subr.mxu0 0.0
          %462 = vmatpush2.msra.mxu0 0.0
          %463 = vmatprep.subr.mxu0 0.0
          %464 = vmatpush2.msra.mxu0 0.0
          %465 = vmatprep.subr.mxu0 0.0
          %466 = vmatpush2.msra.mxu0 0.0
          %467 = vmatprep.subr.mxu0 0.0
          %468 = vmatpush2.msra.mxu0 0.0
          %469 = vmatprep.subr.mxu0 0.0
          %470 = vmatpush2.msra.mxu0 0.0
          %471 = vmatprep.subr.mxu0 0.0
          %472 = vmatpush2.msra.mxu0 0.0
          %473 = vmatprep.subr.mxu0 0.0
          %474 = vmatpush2.msra.mxu0 0.0
          %475 = vmatprep.mubr.f32.mxu0 0.0
          %476 = vmatmul.mubr.f32.gmra.mxu0 %v409
          %v477 = vpop.f32.mrf.mxu0
          %v478 = vadd.f32 0.0, %v477
          %v479 = vpop.f32.mrf.mxu0
          %480 = vdwg.mxu0
          %v481 = vpack.c.bf16 %v478, %v478
          %483 = vrot.lane.b32.xlu0 %v308, 112
          %v484 = vpop.permute.xlu0 %483
          %v486 = vpack.c.bf16 %v484, %v308
          %vm487 = vcmask 130048
          %v489 = vsel %vm487, %v486, 0
          %v492 = vsel %vm487, %v481, 0
          %494 = vmatprep.subr.bf16.mxu0 0
          %495 = vmatpush1.bf16.xpose.msra.mxu0 0
          %496 = vmatprep.subr.bf16.mxu0 0
          %497 = vmatpush1.bf16.xpose.msra.mxu0 0
          %498 = vmatprep.subr.bf16.mxu0 0
          %499 = vmatpush1.bf16.xpose.msra.mxu0 0
          %500 = vmatprep.subr.bf16.mxu0 0
          %501 = vmatpush1.bf16.xpose.msra.mxu0 0
          %502 = vmatprep.subr.bf16.mxu0 0
          %503 = vmatpush1.bf16.xpose.msra.mxu0 0
          %504 = vmatprep.subr.bf16.mxu0 0
          %505 = vmatpush1.bf16.xpose.msra.mxu0 0
          %506 = vmatprep.subr.bf16.mxu0 0
          %507 = vmatpush1.bf16.xpose.msra.mxu0 0
          %508 = vmatprep.subr.bf16.mxu0 0
          %509 = vmatpush1.bf16.xpose.msra.mxu0 %v492
          %510 = vmatprep.subr.bf16.mxu0 0
          %511 = vmatpush2.bf16.xpose.msra.mxu0 0
          %512 = vmatprep.subr.bf16.mxu0 0
          %513 = vmatpush2.bf16.xpose.msra.mxu0 0
          %514 = vmatprep.subr.bf16.mxu0 0
          %515 = vmatpush2.bf16.xpose.msra.mxu0 0
          %516 = vmatprep.subr.bf16.mxu0 0
          %517 = vmatpush2.bf16.xpose.msra.mxu0 0
          %518 = vmatprep.subr.bf16.mxu0 0
          %519 = vmatpush2.bf16.xpose.msra.mxu0 0
          %520 = vmatprep.subr.bf16.mxu0 0
          %521 = vmatpush2.bf16.xpose.msra.mxu0 0
          %522 = vmatprep.subr.bf16.mxu0 0
          %523 = vmatpush2.bf16.xpose.msra.mxu0 0
          %524 = vmatprep.subr.bf16.mxu0 0
          %525 = vmatpush2.bf16.xpose.msra.mxu0 0
          %526 = vmatprep.mubr.bf16.mxu0 0
          %527 = vmatmul.mubr.bf16.gmra.mxu0 %v489
          %v528 = vpop.f32.mrf.mxu0
          %v529 = vadd.f32 0.0, %v528
          %v530 = vpop.f32.mrf.mxu0
          %v531 = vpop.f32.mrf.mxu0
          %v532 = vadd.f32 0.0, %v531
          %v533 = vpop.f32.mrf.mxu0
          %534 = vdwg.mxu0
          %v535 = vsel %vm407, %v529, -inf
          %536 = vmax.xlane.f32.xlu0 %v535
          %v537 = vpop.xlane.xlu0 %536
          %v538 = vsel %vm407, %v532, -inf
          %539 = vmax.xlane.f32.xlu0 %v538
          %v540 = vpop.xlane.xlu0 %539
          %v541 = vsub.f32 %v529, %v537
          %v542 = vsub.f32 %v532, %v540
          %v543 = vmul.f32 %v541, 1.442695
          %v544 = vpow.pop %v543
          %v545 = vmul.f32 %v542, 1.442695
          %v546 = vpow.pop %v545
          %v547 = vsel %vm407, %v544, 0.0
          %548 = vadd.xlane.f32.xlu0 %v547
          %v549 = vpop.xlane.xlu0 %548
          %v550 = vsel %vm407, %v546, 0.0
          %551 = vadd.xlane.f32.xlu0 %v550
          %v552 = vpop.xlane.xlu0 %551
          %v553 = vrcp.pop %v549
          %v554 = vrcp.pop %v552
          %v555 = vmul.f32 %v544, %v553
          %v556 = vmul.f32 %v546, %v554
          %v557 = vpack.c.bf16 %v556, %v555
          %v559 = vsel %vm407, %v557, 0
          %vm561 = vcmask 1043456
          %v562 = vsel %vm561, %v481, 0
          %564 = vmatprep.subr.bf16.mxu0 0
          %565 = vmatpush1.bf16.msra.mxu0 0
          %566 = vmatprep.subr.bf16.mxu0 0
          %567 = vmatpush1.bf16.msra.mxu0 0
          %568 = vmatprep.subr.bf16.mxu0 0
          %569 = vmatpush1.bf16.msra.mxu0 0
          %570 = vmatprep.subr.bf16.mxu0 0
          %571 = vmatpush1.bf16.msra.mxu0 0
          %572 = vmatprep.subr.bf16.mxu0 0
          %573 = vmatpush1.bf16.msra.mxu0 0
          %574 = vmatprep.subr.bf16.mxu0 0
          %575 = vmatpush1.bf16.msra.mxu0 0
          %576 = vmatprep.subr.bf16.mxu0 0
          %577 = vmatpush1.bf16.msra.mxu0 0
          %578 = vmatprep.subr.bf16.mxu0 0
          %579 = vmatpush1.bf16.msra.mxu0 %v562
          %580 = vmatprep.subr.bf16.mxu0 0
          %581 = vmatpush2.bf16.msra.mxu0 0
          %582 = vmatprep.subr.bf16.mxu0 0
          %583 = vmatpush2.bf16.msra.mxu0 0
          %584 = vmatprep.subr.bf16.mxu0 0
          %585 = vmatpush2.bf16.msra.mxu0 0
          %586 = vmatprep.subr.bf16.mxu0 0
          %587 = vmatpush2.bf16.msra.mxu0 0
          %588 = vmatprep.subr.bf16.mxu0 0
          %589 = vmatpush2.bf16.msra.mxu0 0
          %590 = vmatprep.subr.bf16.mxu0 0
          %591 = vmatpush2.bf16.msra.mxu0 0
          %592 = vmatprep.subr.bf16.mxu0 0
          %593 = vmatpush2.bf16.msra.mxu0 0
          %594 = vmatprep.subr.bf16.mxu0 0
          %595 = vmatpush2.bf16.msra.mxu0 0
          %596 = vmatprep.mubr.bf16.mxu0 0
          %597 = vmatmul.mubr.bf16.gmra.mxu0 %v559
          %v598 = vpop.f32.mrf.mxu0
          %v599 = vadd.f32 0.0, %v598
          %v600 = vpop.f32.mrf.mxu0
          %v601 = vpop.f32.mrf.mxu0
          %v602 = vadd.f32 0.0, %v601
          %v603 = vpop.f32.mrf.mxu0
          %604 = vdwg.mxu0
          %606 = vrot.lane.b32.xlu0 %v602, 16
          %v607 = vpop.permute.xlu0 %606
          %v609 = vsel %vm487, %v599, %v607
          %v610 = vpack.c.bf16 %v609, %v609
          %s611 = scalar_lea.vmem %s2, 32
          %v612 = vld [vmem:[%s611] sm:$0xf]
          %v613 = vld [vmem:[%s611 + $0x4] sm:$0xf]
          %v614 = vld [vmem:[%s611 + $0x8] sm:$0xf]
          %v615 = vld [vmem:[%s611 + $0xc] sm:$0xf]
          %v616 = vlaneseq
          %v617 = vshrl.u32 %v616, 7
          %v618 = vsub.s32 2, %v617
          %v619 = vrot.slane %v248, %v618
          %v624 = vunpack.c.l.b16 %v612
          %v625 = vunpack.c.l.b16 %v613
          %v626 = vunpack.c.l.b16 %v614
          %v627 = vunpack.c.l.b16 %v615
          %v628 = vpack.c.b16 %v625, %v624
          %v629 = vpack.c.b16 %v627, %v626
          %v633 = vsel %vm269, %v610, 0
          %635 = vmatprep.subr.bf16.mxu0 0
          %636 = vmatpush1.bf16.msra.mxu0 0
          %637 = vmatprep.subr.bf16.mxu0 0
          %638 = vmatpush1.bf16.msra.mxu0 0
          %639 = vmatprep.subr.bf16.mxu0 0
          %640 = vmatpush1.bf16.msra.mxu0 0
          %641 = vmatprep.subr.bf16.mxu0 0
          %642 = vmatpush1.bf16.msra.mxu0 0
          %643 = vmatprep.subr.bf16.mxu0 0
          %644 = vmatpush1.bf16.msra.mxu0 0
          %645 = vmatprep.subr.bf16.mxu0 0
          %646 = vmatpush1.bf16.msra.mxu0 0
          %647 = vmatprep.subr.bf16.mxu0 0
          %648 = vmatpush1.bf16.msra.mxu0 %v629
          %649 = vmatprep.subr.bf16.mxu0 0
          %650 = vmatpush1.bf16.msra.mxu0 %v628
          %651 = vmatprep.subr.bf16.mxu0 0
          %652 = vmatpush2.bf16.msra.mxu0 0
          %653 = vmatprep.subr.bf16.mxu0 0
          %654 = vmatpush2.bf16.msra.mxu0 0
          %655 = vmatprep.subr.bf16.mxu0 0
          %656 = vmatpush2.bf16.msra.mxu0 0
          %657 = vmatprep.subr.bf16.mxu0 0
          %658 = vmatpush2.bf16.msra.mxu0 0
          %659 = vmatprep.subr.bf16.mxu0 0
          %660 = vmatpush2.bf16.msra.mxu0 0
          %661 = vmatprep.subr.bf16.mxu0 0
          %662 = vmatpush2.bf16.msra.mxu0 0
          %663 = vmatprep.subr.bf16.mxu0 0
          %664 = vmatpush2.bf16.msra.mxu0 0
          %665 = vmatprep.subr.bf16.mxu0 0
          %666 = vmatpush2.bf16.msra.mxu0 0
          %667 = vmatprep.mubr.bf16.mxu0 0
          %668 = vmatmul.mubr.bf16.gmra.mxu0 %v633
          %v669 = vpop.f32.mrf.mxu0
          %v670 = vadd.f32 %v619, %v669
          %v671 = vpop.f32.mrf.mxu0
          %v672 = vpop.f32.mrf.mxu0
          %v673 = vpop.f32.mrf.mxu0
          %674 = vdwg.mxu0
          %v675 = vsel %vm269, %v670, 0.0
          %676 = vadd.xlane.f32.xlu0 %v675
          %v677 = vpop.xlane.xlu0 %676
          %v678 = vrcp.pop 32.0
          %v679 = vmul.f32 %v677, %v678
          %v680 = vsub.f32 %v670, %v679
          %v681 = vmul.f32 %v680, %v680
          %v682 = vsel %vm269, %v681, 0.0
          %683 = vadd.xlane.f32.xlu0 %v682
          %v684 = vpop.xlane.xlu0 %683
          %v685 = vmul.f32 %v684, %v678
          %v686 = vadd.f32 %v685, 1e-05
          %v687 = vrsqrt.pop %v686
          %v688 = vmul.f32 %v680, %v687
          %v689 = vlaneseq
          %v690 = vshrl.u32 %v689, 7
          %v691 = vsub.s32 4, %v690
          %v692 = vrot.slane %v248, %v691
          %v693 = vmul.f32 %v688, %v692
          %v694 = vlaneseq
          %v695 = vshrl.u32 %v694, 7
          %v696 = vsub.s32 5, %v695
          %v697 = vrot.slane %v248, %v696
          %v698 = vadd.f32 %v693, %v697
          %v699 = vadd.f32 %v698, %v246
          %700 = vst.msk [vmem:[%s233] sm:$0xff] %vm269, %v699
          %701 = vst.msk [vmem:[%s240] sm:$0xff] %vm269, 0.0
          %702 = vst.msk [vmem:[%s240 + $0x8] sm:$0xff] %vm269, 0.0
        $region44: #{tpu_custom_call.1} parent=39 // pred_fallthru
          _
        %p703 = scmp.eq.s32.totalorder %s24, 1
        // Predicated region
        $region45: #{tpu_custom_call.1} parent=39 // pred_check
          %p704 = pneg %p703
        $region46: #{tpu_custom_call.1} parent=39 // pred_check_branch
          %706 = sbr.rel (%p704) target = $region48
        $region47: #{tpu_custom_call.1} parent=39 // pred_region
          %v707 = vld [vmem:[%s3] sm:$0xff]
          %v708 = vld [vmem:[%s1] sm:$0xff]
          %v709 = vld [vmem:[%s1 + $0x8] sm:$0xff]
          %v710 = vpack.c.bf16 %v709, %v708
          %s711 = scalar_lea.vmem %s2, 48
          %v712 = vld [vmem:[%s711] sm:$0xf]
          %v713 = vld [vmem:[%s711 + $0x4] sm:$0xf]
          %v714 = vld [vmem:[%s711 + $0x8] sm:$0xf]
          %v715 = vld [vmem:[%s711 + $0xc] sm:$0xf]
          %v716 = vlaneseq
          %v717 = vshrl.u32 %v716, 7
          %v718 = vsub.s32 3, %v717
          %v719 = vrot.slane %v707, %v718
          %v724 = vunpack.c.l.b16 %v712
          %v725 = vunpack.c.l.b16 %v713
          %v726 = vunpack.c.l.b16 %v714
          %v727 = vunpack.c.l.b16 %v715
          %v728 = vpack.c.b16 %v725, %v724
          %v729 = vpack.c.b16 %v727, %v726
          %vm732 = vcmask 261120
          %v734 = vsel %vm732, %v710, 0
          %736 = vmatprep.subr.bf16.mxu0 0
          %737 = vmatpush1.bf16.msra.mxu0 0
          %738 = vmatprep.subr.bf16.mxu0 0
          %739 = vmatpush1.bf16.msra.mxu0 0
          %740 = vmatprep.subr.bf16.mxu0 0
          %741 = vmatpush1.bf16.msra.mxu0 0
          %742 = vmatprep.subr.bf16.mxu0 0
          %743 = vmatpush1.bf16.msra.mxu0 0
          %744 = vmatprep.subr.bf16.mxu0 0
          %745 = vmatpush1.bf16.msra.mxu0 0
          %746 = vmatprep.subr.bf16.mxu0 0
          %747 = vmatpush1.bf16.msra.mxu0 0
          %748 = vmatprep.subr.bf16.mxu0 0
          %749 = vmatpush1.bf16.msra.mxu0 %v729
          %750 = vmatprep.subr.bf16.mxu0 0
          %751 = vmatpush1.bf16.msra.mxu0 %v728
          %752 = vmatprep.subr.bf16.mxu0 0
          %753 = vmatpush2.bf16.msra.mxu0 0
          %754 = vmatprep.subr.bf16.mxu0 0
          %755 = vmatpush2.bf16.msra.mxu0 0
          %756 = vmatprep.subr.bf16.mxu0 0
          %757 = vmatpush2.bf16.msra.mxu0 0
          %758 = vmatprep.subr.bf16.mxu0 0
          %759 = vmatpush2.bf16.msra.mxu0 0
          %760 = vmatprep.subr.bf16.mxu0 0
          %761 = vmatpush2.bf16.msra.mxu0 0
          %762 = vmatprep.subr.bf16.mxu0 0
          %763 = vmatpush2.bf16.msra.mxu0 0
          %764 = vmatprep.subr.bf16.mxu0 0
          %765 = vmatpush2.bf16.msra.mxu0 0
          %766 = vmatprep.subr.bf16.mxu0 0
          %767 = vmatpush2.bf16.msra.mxu0 0
          %768 = vmatprep.mubr.bf16.mxu0 0
          %769 = vmatmul.mubr.bf16.gmra.mxu0 %v734
          %v770 = vpop.f32.mrf.mxu0
          %v771 = vadd.f32 %v719, %v770
          %v772 = vpop.f32.mrf.mxu0
          %v773 = vpop.f32.mrf.mxu0
          %v774 = vadd.f32 %v719, %v773
          %v775 = vpop.f32.mrf.mxu0
          %776 = vdwg.mxu0
          %v777 = vsel %vm732, %v771, 0.0
          %778 = vadd.xlane.f32.xlu0 %v777
          %v779 = vpop.xlane.xlu0 %778
          %v780 = vsel %vm732, %v774, 0.0
          %781 = vadd.xlane.f32.xlu0 %v780
          %v782 = vpop.xlane.xlu0 %781
          %v783 = vrcp.pop 32.0
          %v784 = vmul.f32 %v779, %v783
          %v785 = vmul.f32 %v782, %v783
          %v786 = vsub.f32 %v771, %v784
          %v787 = vsub.f32 %v774, %v785
          %v788 = vmul.f32 %v786, %v786
          %v789 = vmul.f32 %v787, %v787
          %v790 = vsel %vm732, %v788, 0.0
          %791 = vadd.xlane.f32.xlu0 %v790
          %v792 = vpop.xlane.xlu0 %791
          %v793 = vsel %vm732, %v789, 0.0
          %794 = vadd.xlane.f32.xlu0 %v793
          %v795 = vpop.xlane.xlu0 %794
          %v796 = vmul.f32 %v792, %v783
          %v797 = vmul.f32 %v795, %v783
          %v798 = vadd.f32 %v796, 1e-05
          %v799 = vadd.f32 %v797, 1e-05
          %v800 = vrsqrt.pop %v798
          %v801 = vrsqrt.pop %v799
          %v802 = vmul.f32 %v786, %v800
          %v803 = vmul.f32 %v787, %v801
          %v804 = vlaneseq
          %v805 = vshrl.u32 %v804, 7
          %v806 = vsub.s32 6, %v805
          %v807 = vrot.slane %v707, %v806
          %v808 = vmul.f32 %v802, %v807
          %v809 = vmul.f32 %v803, %v807
          %v810 = vlaneseq
          %v811 = vshrl.u32 %v810, 7
          %v812 = vsub.s32 7, %v811
          %v813 = vrot.slane %v707, %v812
          %v814 = vadd.f32 %v808, %v813
          %v815 = vadd.f32 %v809, %v813
          %v816 = vadd.f32 %v814, %v708
          %v817 = vadd.f32 %v815, %v709
          %818 = vst.msk [vmem:[%s240] sm:$0xff] %vm732, %v816
          %819 = vst.msk [vmem:[%s240 + $0x8] sm:$0xff] %vm732, %v817
          %820 = vst.msk [vmem:[%s233] sm:$0xff] %vm732, 0.0
        $region48: #{tpu_custom_call.1} parent=39 // pred_fallthru
          _
        %s821 = sand.u32 %s137, 1
        %s822 = scalar_lea.sflag [#allocation3], %s821
        %s823 = sand.u32 %s137, 1
        %s824 = smul.addr %s823, 8
        %s825 = scalar_lea.vmem [#allocation2], %s824
        %s826 = sand.u32 %s163, 1
        %s827 = scalar_lea.sflag [#allocation5], %s826
        %s828 = sand.u32 %s163, 1
        %s829 = smul.addr %s828, 16
        %s830 = scalar_lea.vmem [#allocation4], %s829
        // Predicated region
        $region49: #{tpu_custom_call.1} parent=39 // pred_check
          %p831 = pneg %p147
        $region50: #{tpu_custom_call.1} parent=39 // pred_check_branch
          %833 = sbr.rel (%p831) target = $region52
        $region51: #{tpu_custom_call.1} parent=39 // pred_region
          %s835 = ssub.s32 128, 128
          %836 = vsyncadd %s822, %s835
          %s837 = smul.addr %s24, 128
          %s838 = scalar_lea.hbm %s5, %s837
          %s840 = sshll.u32 %s825, 4
          %s841 = int_to_ptr.vmem [resolvable:$true] %s840
          %843 = dma.vmem_to_hbm [thread:$0]  %s841, 128, %s838, %s822
        $region52: #{tpu_custom_call.1} parent=39 // pred_fallthru
          _
        // Predicated region
        $region53: #{tpu_custom_call.1} parent=39 // pred_check
          %p844 = pneg %p173
        $region54: #{tpu_custom_call.1} parent=39 // pred_check_branch
          %846 = sbr.rel (%p844) target = $region56
        $region55: #{tpu_custom_call.1} parent=39 // pred_region
          %s848 = ssub.s32 256, 256
          %849 = vsyncadd %s827, %s848
          %s850 = smul.addr %s24, 2
          %s851 = smul.addr %s850, 128
          %s852 = scalar_lea.hbm %s6, %s851
          %s853 = sshll.u32 %s830, 4
          %s854 = int_to_ptr.vmem [resolvable:$true] %s853
          %859 = dma.vmem_to_hbm [thread:$0]  %s854, 256, %s852, %s827, 128, 128, 8
        $region56: #{tpu_custom_call.1} parent=39 // pred_fallthru
          _
      $region40: #{tpu_custom_call.1} parent=5 // pred_fallthru
        _
      %p860 = scmp.le.s32.totalorder 2, %s19
      // Predicated region
      $region57: #{tpu_custom_call.1} parent=5 // pred_check
        %p861 = pneg %p860
      $region58: #{tpu_custom_call.1} parent=5 // pred_check_branch
        %863 = sbr.rel (%p861) target = $region60
      $region59: #{tpu_custom_call.1} parent=5 // pred_region
        %s864 = ssub.s32 %s19, 2
        // Predicated region
        $region61: #{tpu_custom_call.1} parent=59 // pred_check
          %p865 = pneg %p153
        $region62: #{tpu_custom_call.1} parent=59 // pred_check_branch
          %867 = sbr.rel (%p865) target = $region64
        $region63: #{tpu_custom_call.1} parent=59 // pred_region
          %s868 = sand.u32 %s138, 1
          %s869 = scalar_lea.sflag [#allocation3], %s868
          %s870 = sand.u32 %s138, 1
          %s871 = smul.addr %s870, 8
          %s872 = scalar_lea.vmem [#allocation2], %s871
          %873 = dma.done %s869, 128
        $region64: #{tpu_custom_call.1} parent=59 // pred_fallthru
          _
        // Predicated region
        $region65: #{tpu_custom_call.1} parent=59 // pred_check
          %p874 = pneg %p179
        $region66: #{tpu_custom_call.1} parent=59 // pred_check_branch
          %876 = sbr.rel (%p874) target = $region68
        $region67: #{tpu_custom_call.1} parent=59 // pred_region
          %s877 = sand.u32 %s164, 1
          %s878 = scalar_lea.sflag [#allocation5], %s877
          %s879 = sand.u32 %s164, 1
          %s880 = smul.addr %s879, 16
          %s881 = scalar_lea.vmem [#allocation4], %s880
          %882 = dma.done %s878, 256
        $region68: #{tpu_custom_call.1} parent=59 // pred_fallthru
          _
      $region60: #{tpu_custom_call.1} parent=5 // pred_fallthru
        _
    $region6: #{tpu_custom_call.1} parent=1 // loop_footer
      %s23 = sadd.s32 1, %s19
    $region7: #{tpu_custom_call.1} parent=1 // loop_footer_branch
      %18 = sbr.rel target = $region3
    $region8: #{tpu_custom_call.1} parent=1 // loop_exit
      _
    %883 = vsyncpa [#allocation3], 1
    %s884 = scalar_lea.sflag [#allocation3], 1
    %885 = vsyncpa %s884, 1
    %886 = vsyncpa [#allocation5], 1
    %s887 = scalar_lea.sflag [#allocation5], 1
    %888 = vsyncpa %s887, 1

</llo_original>
